<compile_context>
chip_gen: v6e
topology: v6e:2x2x1
jax: 0.10.0
libtpu: 0.0.40
codegen_flags: <defaults>
</compile_context>

<pallas_src>
import functools

import jax
import jax.numpy as jnp
from jax.experimental import pallas as pl
from jax.experimental.pallas import tpu as pltpu

_MIB = 1024 * 1024


def _rmsnorm_kernel(x_ref, w_ref, o_ref, *, eps: float):
    # x_ref: (block_rows, dim); w_ref: (1, dim) holding (1 + weight) in f32;
    # o_ref: (block_rows, dim) in the input dtype.
    #
    # Pass 1: sum of squares. The f32 upcast dies right after the reduction.
    x = x_ref[...].astype(jnp.float32)                 # compute in f32 (matches x.float())
    ms = jnp.mean(x * x, axis=-1, keepdims=True)       # mean of squares over last dim
    inv = jax.lax.rsqrt(ms + eps)
    # Pass 2: re-read and re-cast the narrow-dtype input tile instead of
    # keeping the whole f32 tile live across the reduction — trades a cheap
    # vld+cast for eliminating a ~2x-tile-bytes spill to VMEM.
    x2 = x_ref[...].astype(jnp.float32)
    o_ref[...] = ((x2 * inv) * w_ref[...]).astype(o_ref.dtype)   # output.type_as(x)
    # NOTE: on the ragged final grid block the padded rows compute on
    # undefined data (possibly inf/NaN); those writes are masked by Pallas and
    # rows are independent, so this is benign — do not "fix" it by reading
    # padded output rows.


def _choose_block_rows(rows: int, dim: int, itemsize: int,
                       target_tile_bytes: int = 4 * _MIB,
                       max_rows: int = 8192,
                       min_grid_steps: int = 4) -> int:
    """Largest row-tile (multiple of 32) keeping one input tile ~4 MiB,
    then shrunk (if possible) so the grid has enough steps to feed 2 TCs."""
    br = target_tile_bytes // max(1, dim * itemsize)
    br = int(max(32, min(max_rows, br)))
    br = (br // 32) * 32
    # Don't pick a block much larger than the whole problem.
    rows_rounded = ((rows + 31) // 32) * 32
    br = max(32, min(br, rows_rounded))
    # Ensure the single "parallel" grid axis has >= min_grid_steps steps when
    # possible (v7x has 2 TensorCores; a 1-2 step grid idles one of them).
    while br > 64 and (rows + br - 1) // br < min_grid_steps:
        br = max(32, ((br // 2) // 32) * 32)
    return br


def _vmem_limit_bytes() -> int:
    """Scoped-VMEM limit scaled per TPU generation: ~half of physical VMEM,
    capped at 64 MiB (v5e/v6e: 128 MiB physical; v7x: only 64 MiB)."""
    try:
        cap = int(pltpu.get_tpu_info().vmem_capacity_bytes)
        return int(min(64 * _MIB, max(32 * _MIB, cap // 2)))
    except Exception:
        # Safe everywhere: above v5e's 16 MiB scoped default, half of v7x VMEM.
        return 32 * _MIB


def gemma3_rmsnorm(x: jax.Array, weight: jax.Array, eps: float = 1e-6,
                   block_rows: int | None = None) -> jax.Array:
    """RMSNorm over the last dim of `x`, scale = (1 + weight). Returns x.dtype.

    NOTE: for peak efficiency `dim` should be a multiple of 128 (lane-dense
    output stores). Real Gemma3 dims (256, 1152, 2560, ...) satisfy this;
    smaller dims still run correctly but fall back to masked stores.
    """
    orig_shape = x.shape
    dim = orig_shape[-1]
    assert weight.shape == (dim,)

    x2d = x.reshape(-1, dim)
    rows = x2d.shape[0]
    itemsize = jnp.dtype(x.dtype).itemsize

    if block_rows is None:
        block_rows = _choose_block_rows(rows, dim, itemsize)

    # Hoist (1 + weight) in f32 out of the kernel body; constant index_map
    # keeps it VMEM-resident across the whole grid.
    w_plus_1 = (1.0 + weight.astype(jnp.float32)).reshape(1, dim)

    grid = (pl.cdiv(rows, block_rows),)   # ragged last block handled by Pallas

    # Advisory scheduling hint: this op is HBM-bound (read x, write out).
    cost = pl.CostEstimate(
        flops=6 * rows * dim,
        transcendentals=rows,
        bytes_accessed=2 * rows * dim * itemsize + dim * 4,
    )

    out = pl.pallas_call(
        functools.partial(_rmsnorm_kernel, eps=eps),
        out_shape=jax.ShapeDtypeStruct((rows, dim), x.dtype),
        grid_spec=pltpu.PrefetchScalarGridSpec(
            num_scalar_prefetch=0,
            grid=grid,
            in_specs=[
                pl.BlockSpec((block_rows, dim), lambda i: (i, 0)),
                pl.BlockSpec((1, dim), lambda i: (0, 0)),
            ],
            out_specs=pl.BlockSpec((block_rows, dim), lambda i: (i, 0)),
        ),
        compiler_params=pltpu.CompilerParams(
            dimension_semantics=("parallel",),
            vmem_limit_bytes=_vmem_limit_bytes(),
        ),
        cost_estimate=cost,
    )(x2d, w_plus_1)

    return out.reshape(orig_shape)


def gemma3_rmsnorm_ref(x, weight, eps=1e-6):
    xf = x.astype(jnp.float32)
    inv = jax.lax.rsqrt(jnp.mean(xf * xf, axis=-1, keepdims=True) + eps)
    y = xf * inv * (1.0 + weight.astype(jnp.float32))
    return y.astype(x.dtype)


if __name__ == "__main__":
    key = jax.random.PRNGKey(0)
    kx, kw, kx2, kw2, kx3, kw3 = jax.random.split(key, 6)

    # Case 1: module-like small shape; bf16 input exercises float()/type_as.
    batch, seq, hidden = 2, 8, 32
    x = jax.random.normal(kx, (batch, seq, hidden), dtype=jnp.float32).astype(jnp.bfloat16)
    weight = 0.1 * jax.random.normal(kw, (hidden,), dtype=jnp.float32)

    out = jax.block_until_ready(gemma3_rmsnorm(x, weight, eps=1e-6))
    ref = gemma3_rmsnorm_ref(x, weight, eps=1e-6)
    assert out.shape == x.shape and out.dtype == x.dtype
    assert jnp.allclose(out.astype(jnp.float32), ref.astype(jnp.float32),
                        atol=1e-2, rtol=1e-2)

    # Case 2: ragged row count (rows not a multiple of block_rows) + lane-dense dim.
    x2 = jax.random.normal(kx2, (3, 7, 256), dtype=jnp.float32).astype(jnp.bfloat16)
    weight2 = 0.05 * jax.random.normal(kw2, (256,), dtype=jnp.float32)
    out2 = jax.block_until_ready(gemma3_rmsnorm(x2, weight2, eps=1e-6))
    ref2 = gemma3_rmsnorm_ref(x2, weight2, eps=1e-6)
    assert out2.shape == x2.shape and out2.dtype == x2.dtype
    assert jnp.allclose(out2.astype(jnp.float32), ref2.astype(jnp.float32),
                        atol=1e-2, rtol=1e-2)

    # Case 3: enough rows to exercise a multi-step grid (block_rows halving path).
    x3 = jax.random.normal(kx3, (4, 64, 256), dtype=jnp.float32)
    weight3 = 0.05 * jax.random.normal(kw3, (256,), dtype=jnp.float32)
    out3 = jax.block_until_ready(gemma3_rmsnorm(x3, weight3, eps=1e-6))
    ref3 = gemma3_rmsnorm_ref(x3, weight3, eps=1e-6)
    assert out3.shape == x3.shape and out3.dtype == x3.dtype
    assert jnp.allclose(out3, ref3, atol=1e-5, rtol=1e-5)

    print("KERNEL_OK")
</pallas_src>

<mosaic_0001>
module attributes {stable_mosaic.version = 11 : i64} {
  func.func @_rmsnorm_kernel(%arg0: i32, %arg1: memref<32x32xbf16, #tpu.memory_space<vmem>>, %arg2: memref<1x32xf32, #tpu.memory_space<vmem>>, %arg3: memref<32x32xbf16, #tpu.memory_space<vmem>>) attributes {dimension_semantics = [#tpu.dimension_semantics<parallel>], iteration_bounds = array<i64: 1>, scalar_prefetch = 0 : i64, scratch_operands = 0 : i64, tpu.core_type = #tpu.core_type<tc>, window_params = [{transform_indices = @transform_0, window_bounds = array<i64: 32, 32>}, {pipeline_mode = #tpu.pipeline_mode<synchronous>, transform_indices = @transform_1, window_bounds = array<i64: 1, 32>}, {transform_indices = @transform_2, window_bounds = array<i64: 32, 32>}]} {
    %c0 = arith.constant 0 : index
    %c0_0 = arith.constant 0 : index
    %0 = vector.load %arg1[%c0, %c0_0] : memref<32x32xbf16, #tpu.memory_space<vmem>>, vector<32x32xbf16>
    %1 = arith.extf %0 : vector<32x32xbf16> to vector<32x32xf32>
    %2 = arith.mulf %1, %1 : vector<32x32xf32>
    %cst = arith.constant dense<0.000000e+00> : vector<32xf32>
    %3 = vector.multi_reduction <add>, %2, %cst [1] : vector<32x32xf32> to vector<32xf32>
    %4 = vector.shape_cast %3 : vector<32xf32> to vector<32x1xf32>
    %cst_1 = arith.constant 3.200000e+01 : f32
    %5 = vector.broadcast %cst_1 : f32 to vector<32x1xf32>
    %6 = arith.divf %4, %5 : vector<32x1xf32>
    %cst_2 = arith.constant 9.99999997E-7 : f32
    %7 = vector.broadcast %cst_2 : f32 to vector<32x1xf32>
    %8 = arith.addf %6, %7 : vector<32x1xf32>
    %9 = math.rsqrt %8 : vector<32x1xf32>
    %c0_3 = arith.constant 0 : index
    %c0_4 = arith.constant 0 : index
    %10 = vector.load %arg1[%c0_3, %c0_4] : memref<32x32xbf16, #tpu.memory_space<vmem>>, vector<32x32xbf16>
    %11 = arith.extf %10 : vector<32x32xbf16> to vector<32x32xf32>
    %12 = vector.broadcast %9 : vector<32x1xf32> to vector<32x32xf32>
    %13 = arith.mulf %11, %12 : vector<32x32xf32>
    %c0_5 = arith.constant 0 : index
    %c0_6 = arith.constant 0 : index
    %14 = vector.load %arg2[%c0_5, %c0_6] : memref<1x32xf32, #tpu.memory_space<vmem>>, vector<1x32xf32>
    %15 = vector.broadcast %14 : vector<1x32xf32> to vector<32x32xf32>
    %16 = arith.mulf %13, %15 : vector<32x32xf32>
    %17 = arith.truncf %16 : vector<32x32xf32> to vector<32x32xbf16>
    %c0_7 = arith.constant 0 : index
    %c0_8 = arith.constant 0 : index
    %18 = vector.load %arg3[%c0_7, %c0_8] : memref<32x32xbf16, #tpu.memory_space<vmem>>, vector<32x32xbf16>
    tpu.vector_store %arg3[%c0_7, %c0_8], %17 {strides = array<i32>} : memref<32x32xbf16, #tpu.memory_space<vmem>>, vector<32x32xbf16>,
    return
  }
  func.func @transform_0(%arg0: i32) -> (i32, i32) {
    %c0_i32 = arith.constant 0 : i32
    %c0_i32_0 = arith.constant 0 : i32
    return %arg0, %c0_i32 : i32, i32
  }
  func.func @transform_1(%arg0: i32) -> (i32, i32) {
    %c0_i32 = arith.constant 0 : i32
    %c0_i32_0 = arith.constant 0 : i32
    %c0_i32_1 = arith.constant 0 : i32
    return %c0_i32, %c0_i32_0 : i32, i32
  }
  func.func @transform_2(%arg0: i32) -> (i32, i32) {
    %c0_i32 = arith.constant 0 : i32
    %c0_i32_0 = arith.constant 0 : i32
    return %arg0, %c0_i32 : i32, i32
  }
}

</mosaic_0001>

<llo_original>
// kernel: tpu_custom_call.1
$region0: #{tpu_custom_call.1}
  #allocation0 [shape = 'u32[]', space=smem, size = 0x4, offset = 0x4, fixed_abs, tag = 'smem constant byte address 0x4 - core index']
  #allocation1 [shape = 'u32[144,128]{1,0:T(1,128)}', space=vmem, size = 0x12000, scoped, tag = 'internal scratch']
  %s0 = inlined_call_operand.hbm [shape: bf16[16,32], index: 0, kind: input, shape index: {}]
  %s1 = inlined_call_operand.vmem [shape: f32[1,32], index: 1, kind: input, shape index: {}]
  %s2 = inlined_call_operand.hbm [shape: bf16[16,32], index: 2, kind: output, shape index: {}]
  %s3 = sld [smem:[#allocation0]]
  $region22: #{tpu_custom_call.1} parent=0
    _
  %s5 = ssub.s32 1, %s3
  %s6 = scalar_select 0, %s5, %s3
  $region1: #{tpu_custom_call.1} parent=0
    #allocation2 [shape = 'u8[8192]{0}', space=vmem, size = 0x2000, scoped, tag = 'input window, operand 0, single buffered']
    #allocation3 [shape = 's32[1]{0}', space=sflag, size = 0x4, scoped, tag = 'scoped memory for tpu_custom_call.1']
    #allocation4 [shape = 's32[1]{0}', space=sflag, size = 0x4, scoped, tag = 'scoped memory for tpu_custom_call.1']
    #allocation5 [shape = 'u8[8192]{0}', space=vmem, size = 0x2000, scoped, tag = 'output window, operand 0, single buffered']
    %7 = vsyncpa [#allocation3], 0
    %8 = vsyncpa [#allocation4], 0
    // Predicated region
    $region2: #{tpu_custom_call.1} parent=1 // pred_check
      _
    $region3: #{tpu_custom_call.1} parent=1 // pred_check_branch
      %10 = sbr.rel (0) target = $region5
    $region4: #{tpu_custom_call.1} parent=1 // pred_region
      %s12 = ssub.s32 256, 128
      %13 = vsyncadd [#allocation3], %s12
      %s14 = sshll.u32 [#allocation2], 4
      %s15 = int_to_ptr.vmem [resolvable:$true] %s14
      %20 = dma.hbm_to_vmem [thread:$0]  %s0, 128, %s15, [#allocation3], 64, 64, 4
    $region5: #{tpu_custom_call.1} parent=1 // pred_fallthru
      _
    // Predicated region
    $region6: #{tpu_custom_call.1} parent=1 // pred_check
      _
    $region7: #{tpu_custom_call.1} parent=1 // pred_check_branch
      %22 = sbr.rel (0) target = $region9
    $region8: #{tpu_custom_call.1} parent=1 // pred_region
      _
    $region9: #{tpu_custom_call.1} parent=1 // pred_fallthru
      _
    // Predicated region
    $region10: #{tpu_custom_call.1} parent=1 // pred_check
      _
    $region11: #{tpu_custom_call.1} parent=1 // pred_check_branch
      %24 = sbr.rel (0) target = $region13
    $region12: #{tpu_custom_call.1} parent=1 // pred_region
      %25 = dma.done [#allocation3], 256
    $region13: #{tpu_custom_call.1} parent=1 // pred_fallthru
      _
    %v26 = vld [vmem:[#allocation2] sm:$0xf]
    %v27 = vld [vmem:[#allocation2 + $0x4] sm:$0xf]
    %v28 = vld [vmem:[#allocation2 + $0x8] sm:$0xf]
    %v29 = vld [vmem:[#allocation2 + $0xc] sm:$0xf]
    %v30 = vunpack.c.l.bf16 %v26
    %v31 = vunpack.c.l.bf16 %v27
    %v32 = vunpack.c.l.bf16 %v28
    %v33 = vunpack.c.l.bf16 %v29
    %v34 = vmul.f32 %v30, %v30
    %v35 = vmul.f32 %v31, %v31
    %v36 = vmul.f32 %v32, %v32
    %v37 = vmul.f32 %v33, %v33
    %vm38 = vcmask 261120
    %v39 = vsel %vm38, %v34, 0.0
    %40 = vadd.xlane.f32.xlu0 %v39
    %v41 = vpop.xlane.xlu0 %40
    %v42 = vsel %vm38, %v35, 0.0
    %43 = vadd.xlane.f32.xlu0 %v42
    %v44 = vpop.xlane.xlu0 %43
    %v45 = vsel %vm38, %v36, 0.0
    %46 = vadd.xlane.f32.xlu0 %v45
    %v47 = vpop.xlane.xlu0 %46
    %v48 = vsel %vm38, %v37, 0.0
    %49 = vadd.xlane.f32.xlu0 %v48
    %v50 = vpop.xlane.xlu0 %49
    %v51 = vrcp.pop 32.0
    %v52 = vmul.f32 %v41, %v51
    %v53 = vmul.f32 %v44, %v51
    %v54 = vmul.f32 %v47, %v51
    %v55 = vmul.f32 %v50, %v51
    %v56 = vadd.f32 %v52, 1e-06
    %v57 = vadd.f32 %v53, 1e-06
    %v58 = vadd.f32 %v54, 1e-06
    %v59 = vadd.f32 %v55, 1e-06
    %v60 = vrsqrt.pop %v56
    %v61 = vrsqrt.pop %v57
    %v62 = vrsqrt.pop %v58
    %v63 = vrsqrt.pop %v59
    %v64 = vmul.f32 %v30, %v60
    %v65 = vmul.f32 %v31, %v61
    %v66 = vmul.f32 %v32, %v62
    %v67 = vmul.f32 %v33, %v63
    %v68 = vld [vmem:[%s1] sm:$0x1]
    %v70 = vlaneseq
    %v71 = vshrl.u32 %v70, 7
    %v72 = vsub.s32 0, %v71
    %v73 = vrot.slane %v68, %v72
    %v75 = vmul.f32 %v64, %v73
    %v76 = vmul.f32 %v65, %v73
    %v77 = vmul.f32 %v66, %v73
    %v78 = vmul.f32 %v67, %v73
    %v79 = vpack.c.bf16 %v76, %v75
    %v80 = vpack.c.bf16 %v78, %v77
    %v83 = vunpack.c.l.b16 %v79
    %v84 = vunpack.c.h.b16 %v79
    %v85 = vunpack.c.l.b16 %v80
    %v86 = vunpack.c.h.b16 %v80
    %v87 = vpack.c.b16 %v83, %v83
    %v88 = vpack.c.b16 %v84, %v84
    %v89 = vpack.c.b16 %v85, %v85
    %v90 = vpack.c.b16 %v86, %v86
    %vm95 = vcmask 257024
    %96 = vst.msk [vmem:[#allocation5] sm:$0xf] %vm95, %v87
    %97 = vst.msk [vmem:[#allocation5 + $0x4] sm:$0xf] %vm95, %v88
    %98 = vst.msk [vmem:[#allocation5 + $0x8] sm:$0xf] %vm95, %v89
    %99 = vst.msk [vmem:[#allocation5 + $0xc] sm:$0xf] %vm95, %v90
    // Predicated region
    $region14: #{tpu_custom_call.1} parent=1 // pred_check
      _
    $region15: #{tpu_custom_call.1} parent=1 // pred_check_branch
      %101 = sbr.rel (0) target = $region17
    $region16: #{tpu_custom_call.1} parent=1 // pred_region
      %s103 = ssub.s32 256, 128
      %104 = vsyncadd [#allocation4], %s103
      %s105 = sshll.u32 [#allocation5], 4
      %s106 = int_to_ptr.vmem [resolvable:$true] %s105
      %111 = dma.vmem_to_hbm [thread:$0]  %s106, 128, %s2, [#allocation4], 64, 64, 4
    $region17: #{tpu_custom_call.1} parent=1 // pred_fallthru
      _
    // Predicated region
    $region18: #{tpu_custom_call.1} parent=1 // pred_check
      _
    $region19: #{tpu_custom_call.1} parent=1 // pred_check_branch
      %113 = sbr.rel (0) target = $region21
    $region20: #{tpu_custom_call.1} parent=1 // pred_region
      %114 = dma.done [#allocation4], 256
    $region21: #{tpu_custom_call.1} parent=1 // pred_fallthru
      _
    %115 = vsyncpa [#allocation3], 1
    %116 = vsyncpa [#allocation4], 1

</llo_original>
